<compile_context>
chip_gen: v7x
topology: tpu7x:2x2x1
jax: 0.10.0
libtpu: 0.0.40
codegen_flags: <defaults>
</compile_context>

<pallas_src>
import functools
import numpy as np
import jax
import jax.numpy as jnp
from jax.experimental import pallas as pl
from jax.experimental.pallas import tpu as pltpu


# ----------------------------------------------------------------------------
# Fused Pallas kernel: full forward pass in one call
# ----------------------------------------------------------------------------
def _fused_forward_kernel(*refs, max_num_hidden_layers, aux_layer, head_hidden_idx):
    # refs layout (inputs, in order), then the single output ref last:
    #   x, aux(padded), mask_scaled,
    #   hW0, hb0,
    #   for i in 1..L-1:
    #       i == aux_layer-1 : W_aux(padded), W_hid, b_aux
    #       else             : W_i, b_i
    #   for each head j      : oW_j, ob_j
    o_ref = refs[-1]
    it = iter(refs[:-1])

    x_ref, aux_ref, mask_ref = next(it), next(it), next(it)
    x = x_ref[...]
    aux = aux_ref[...]
    mask_scaled = mask_ref[...]          # dropout mask with 1/(1-p) pre-folded

    # ---- hidden layer 0 -----------------------------------------------------
    w0 = next(it)[...]
    b0 = next(it)[...]
    h = jnp.maximum(jnp.dot(x, w0, preferred_element_type=jnp.float32) + b0, 0.0)
    hidden = [h]

    # ---- hidden layers 1 .. L-1 (loop unrolls at trace time) ----------------
    for i in range(1, max_num_hidden_layers):
        if i == aux_layer - 1:
            w_aux = next(it)[...]
            w_hid = next(it)[...]
            b_aux = next(it)[...]
            y = (jnp.dot(aux, w_aux, preferred_element_type=jnp.float32)
                 + jnp.dot(hidden[i - 1], w_hid, preferred_element_type=jnp.float32)
                 + b_aux)
            h = jnp.maximum(y, 0.0) * mask_scaled        # AuxDrop (scaled mask)
        else:
            w = next(it)[...]
            b = next(it)[...]
            y = jnp.dot(hidden[i - 1], w, preferred_element_type=jnp.float32) + b
            h = jnp.maximum(y, 0.0)
        hidden.append(h)

    # ---- prediction heads: softmax(hidden[k] @ oW + ob) ---------------------
    outs = []
    for hid_idx in head_hidden_idx:
        ow = next(it)[...]
        ob = next(it)[...]
        logits = jnp.dot(hidden[hid_idx], ow, preferred_element_type=jnp.float32) + ob
        logits = logits - jnp.max(logits, axis=-1, keepdims=True)
        e = jnp.exp(logits)
        denom = jnp.sum(e, axis=-1, keepdims=True)
        outs.append(e * pl.reciprocal(denom, approx=True))

    # Single lane-packed store: (B, n_heads * n_classes)
    o_ref[...] = jnp.concatenate(outs, axis=-1)


# ----------------------------------------------------------------------------
# Wrapper: builds the fused call (mirrors AuxDrop_ODL_RandomInAuxLayer.forward)
# ----------------------------------------------------------------------------
def auxdrop_forward(hW, hb, oW, ob, X, aux_feat, aux_mask, dropout_mask,
                    *, max_num_hidden_layers, aux_layer, dropout_p, n_aux_feat):
    # aux_mask is accepted for API parity but is NOT used by this module
    # variant (the mask is a random Binomial sample, passed as dropout_mask).
    del aux_mask

    scale = 1.0 / (1.0 - dropout_p)
    mask_scaled = (dropout_mask * jnp.float32(scale)).astype(jnp.float32)

    # Split the aux-layer weight so the concat disappears; zero-pad the aux
    # contracting dim to a multiple of 8 for clean sublane alignment.
    W_full = hW[aux_layer - 1]                              # (n_aux + Q, Naux)
    W_aux = W_full[:n_aux_feat, :]
    W_hid = W_full[n_aux_feat:, :]
    pad_k = (-n_aux_feat) % 8
    if pad_k:
        aux_in = jnp.pad(aux_feat, ((0, 0), (0, pad_k)))
        W_aux = jnp.pad(W_aux, ((0, pad_k), (0, 0)))
    else:
        aux_in = aux_feat

    # Heads: i < aux_layer-2 uses (hidden[i+1], oW[i]); i > aux_layer-2 uses
    # (hidden[i+1], oW[i-1]); i == aux_layer-2 (the aux layer output) is skipped.
    head_pairs = []
    for i in range(max_num_hidden_layers - 1):
        if i < aux_layer - 2:
            head_pairs.append((i + 1, i))
        elif i > aux_layer - 2:
            head_pairs.append((i + 1, i - 1))
    head_hidden_idx = tuple(h for h, _ in head_pairs)

    # Flat argument list in the exact order the kernel unpacks.
    args = [X, aux_in, mask_scaled, hW[0], hb[0]]
    for i in range(1, max_num_hidden_layers):
        if i == aux_layer - 1:
            args += [W_aux, W_hid, hb[i]]
        else:
            args += [hW[i], hb[i]]
    for _, oi in head_pairs:
        args += [oW[oi], ob[oi]]

    n_heads = len(head_pairs)
    n_classes = oW[0].shape[1]
    B = X.shape[0]

    kernel = functools.partial(
        _fused_forward_kernel,
        max_num_hidden_layers=max_num_hidden_layers,
        aux_layer=aux_layer,
        head_hidden_idx=head_hidden_idx,
    )
    vmem = pl.BlockSpec(memory_space=pltpu.MemorySpace.VMEM)
    packed = pl.pallas_call(
        kernel,
        out_shape=jax.ShapeDtypeStruct((B, n_heads * n_classes), jnp.float32),
        in_specs=[vmem] * len(args),
        out_specs=vmem,
        compiler_params=pltpu.CompilerParams(vmem_limit_bytes=32 * 1024 * 1024),
    )(*args)

    # (B, n_heads * n_classes) -> (n_heads, B, n_classes)
    return packed.reshape(B, n_heads, n_classes).transpose(1, 0, 2)


# ----------------------------------------------------------------------------
# Parameter construction (deterministic, mimics nn.Linear default init)
# ----------------------------------------------------------------------------
def _init_linear(key, in_f, out_f):
    kw, kb = jax.random.split(key)
    bound = 1.0 / np.sqrt(in_f)
    W = jax.random.uniform(kw, (out_f, in_f), minval=-bound, maxval=bound,
                           dtype=jnp.float32)
    b = jax.random.uniform(kb, (out_f,), minval=-bound, maxval=bound,
                           dtype=jnp.float32)
    # store transposed weight (in, out) and bias as (1, out) for the kernels
    return W.T, b.reshape(1, out_f)


def build_params(key, features_size, max_num_hidden_layers, qtd_neuron,
                 n_classes, aux_layer, n_neuron_aux_layer, n_aux_feat):
    keys = jax.random.split(key, max_num_hidden_layers + (max_num_hidden_layers - 2))
    hW, hb = [], []
    w, b = _init_linear(keys[0], features_size, qtd_neuron)
    hW.append(w); hb.append(b)
    for i in range(max_num_hidden_layers - 1):
        if i + 2 == aux_layer:
            w, b = _init_linear(keys[i + 1], n_aux_feat + qtd_neuron, n_neuron_aux_layer)
        elif i + 1 == aux_layer:
            w, b = _init_linear(keys[i + 1], n_neuron_aux_layer, qtd_neuron)
        else:
            w, b = _init_linear(keys[i + 1], qtd_neuron, qtd_neuron)
        hW.append(w); hb.append(b)
    oW, ob = [], []
    for i in range(max_num_hidden_layers - 2):
        w, b = _init_linear(keys[max_num_hidden_layers + i], qtd_neuron, n_classes)
        oW.append(w); ob.append(b)
    return hW, hb, oW, ob


# ----------------------------------------------------------------------------
# Pure-JAX reference for a sanity check
# ----------------------------------------------------------------------------
def auxdrop_forward_ref(hW, hb, oW, ob, X, aux_feat, dropout_mask,
                        *, max_num_hidden_layers, aux_layer, dropout_p):
    scale = 1.0 / (1.0 - dropout_p)
    hidden = [jax.nn.relu(X @ hW[0] + hb[0])]
    for i in range(1, max_num_hidden_layers):
        if i == aux_layer - 1:
            inp = jnp.concatenate([aux_feat, hidden[i - 1]], axis=1)
            r = jax.nn.relu(inp @ hW[i] + hb[i])
            hidden.append(r * dropout_mask * scale)
        else:
            hidden.append(jax.nn.relu(hidden[i - 1] @ hW[i] + hb[i]))
    preds = []
    for i in range(max_num_hidden_layers - 1):
        if i < aux_layer - 2:
            preds.append(jax.nn.softmax(hidden[i + 1] @ oW[i] + ob[i], axis=1))
        elif i > aux_layer - 2:
            preds.append(jax.nn.softmax(hidden[i + 1] @ oW[i - 1] + ob[i - 1], axis=1))
    return jnp.stack(preds)


# ----------------------------------------------------------------------------
if __name__ == "__main__":
    # small, forward-consistent configuration
    features_size = 16
    max_num_hidden_layers = 6
    qtd_neuron_per_hidden_layer = 32
    n_classes = 4
    aux_layer = 3
    n_neuron_aux_layer = 64
    n_aux_feat = 3
    batch_size = 2
    dropout_p = 0.5

    root = jax.random.PRNGKey(0)
    k_param, k_x, k_aux, k_mask = jax.random.split(root, 4)

    hW, hb, oW, ob = build_params(
        k_param, features_size, max_num_hidden_layers,
        qtd_neuron_per_hidden_layer, n_classes, aux_layer,
        n_neuron_aux_layer, n_aux_feat)

    X = jax.random.normal(k_x, (batch_size, features_size), dtype=jnp.float32)
    aux_feat = jax.random.normal(k_aux, (batch_size, n_aux_feat), dtype=jnp.float32)
    aux_mask = jnp.ones((batch_size, n_aux_feat), dtype=jnp.float32)  # unused here

    # torch.distributions.Binomial(probs=1-p).sample([1, n_neuron_aux_layer])
    # realized on the host with jax.random (kernel consumes it as data).
    # TODO(synk): the in-module random Binomial sampling and the ODL weight
    # update (update_weights) are host-side / training logic, not kernel ops.
    dropout_mask = jax.random.bernoulli(
        k_mask, p=1.0 - dropout_p, shape=(1, n_neuron_aux_layer)).astype(jnp.float32)

    out = auxdrop_forward(
        hW, hb, oW, ob, X, aux_feat, aux_mask, dropout_mask,
        max_num_hidden_layers=max_num_hidden_layers,
        aux_layer=aux_layer, dropout_p=dropout_p, n_aux_feat=n_aux_feat)
    out = jax.block_until_ready(out)

    ref = auxdrop_forward_ref(
        hW, hb, oW, ob, X, aux_feat, dropout_mask,
        max_num_hidden_layers=max_num_hidden_layers,
        aux_layer=aux_layer, dropout_p=dropout_p)

    assert out.shape == (max_num_hidden_layers - 2, batch_size, n_classes), out.shape
    assert bool(jnp.allclose(out, ref, rtol=1e-2, atol=1e-3)), "mismatch vs reference"

    print("KERNEL_OK")
</pallas_src>

<mosaic_0001>
module attributes {stable_mosaic.version = 11 : i64} {
  func.func @_fused_forward_kernel(%arg0: memref<2x16xf32, #tpu.memory_space<vmem>>, %arg1: memref<2x8xf32, #tpu.memory_space<vmem>>, %arg2: memref<1x64xf32, #tpu.memory_space<vmem>>, %arg3: memref<16x32xf32, #tpu.memory_space<vmem>>, %arg4: memref<1x32xf32, #tpu.memory_space<vmem>>, %arg5: memref<32x32xf32, #tpu.memory_space<vmem>>, %arg6: memref<1x32xf32, #tpu.memory_space<vmem>>, %arg7: memref<8x64xf32, #tpu.memory_space<vmem>>, %arg8: memref<32x64xf32, #tpu.memory_space<vmem>>, %arg9: memref<1x64xf32, #tpu.memory_space<vmem>>, %arg10: memref<64x32xf32, #tpu.memory_space<vmem>>, %arg11: memref<1x32xf32, #tpu.memory_space<vmem>>, %arg12: memref<32x32xf32, #tpu.memory_space<vmem>>, %arg13: memref<1x32xf32, #tpu.memory_space<vmem>>, %arg14: memref<32x32xf32, #tpu.memory_space<vmem>>, %arg15: memref<1x32xf32, #tpu.memory_space<vmem>>, %arg16: memref<32x4xf32, #tpu.memory_space<vmem>>, %arg17: memref<1x4xf32, #tpu.memory_space<vmem>>, %arg18: memref<32x4xf32, #tpu.memory_space<vmem>>, %arg19: memref<1x4xf32, #tpu.memory_space<vmem>>, %arg20: memref<32x4xf32, #tpu.memory_space<vmem>>, %arg21: memref<1x4xf32, #tpu.memory_space<vmem>>, %arg22: memref<32x4xf32, #tpu.memory_space<vmem>>, %arg23: memref<1x4xf32, #tpu.memory_space<vmem>>, %arg24: memref<2x16xf32, #tpu.memory_space<vmem>>) attributes {dimension_semantics = [], scalar_prefetch = 0 : i64, scratch_operands = 0 : i64, tpu.core_type = #tpu.core_type<tc>} {
    %c0 = arith.constant 0 : index
    %c0_0 = arith.constant 0 : index
    %0 = vector.load %arg0[%c0, %c0_0] : memref<2x16xf32, #tpu.memory_space<vmem>>, vector<2x16xf32>
    %c0_1 = arith.constant 0 : index
    %c0_2 = arith.constant 0 : index
    %1 = vector.load %arg1[%c0_1, %c0_2] : memref<2x8xf32, #tpu.memory_space<vmem>>, vector<2x8xf32>
    %c0_3 = arith.constant 0 : index
    %c0_4 = arith.constant 0 : index
    %2 = vector.load %arg2[%c0_3, %c0_4] : memref<1x64xf32, #tpu.memory_space<vmem>>, vector<1x64xf32>
    %c0_5 = arith.constant 0 : index
    %c0_6 = arith.constant 0 : index
    %3 = vector.load %arg3[%c0_5, %c0_6] : memref<16x32xf32, #tpu.memory_space<vmem>>, vector<16x32xf32>
    %c0_7 = arith.constant 0 : index
    %c0_8 = arith.constant 0 : index
    %4 = vector.load %arg4[%c0_7, %c0_8] : memref<1x32xf32, #tpu.memory_space<vmem>>, vector<1x32xf32>
    %cst = arith.constant dense<0.000000e+00> : vector<2x32xf32>
    %5 = tpu.matmul %0, %3, %cst {dimension_numbers = #tpu.dot_dimension_numbers<[1], [0], [0], [1], [0, 0, 1, 1], [], []>} : vector<2x16xf32>, vector<16x32xf32>, vector<2x32xf32> -> vector<2x32xf32>
    %6 = vector.broadcast %4 : vector<1x32xf32> to vector<2x32xf32>
    %7 = arith.addf %5, %6 : vector<2x32xf32>
    %cst_9 = arith.constant 0.000000e+00 : f32
    %8 = vector.broadcast %cst_9 : f32 to vector<2x32xf32>
    %9 = arith.maximumf %7, %8 : vector<2x32xf32>
    %c0_10 = arith.constant 0 : index
    %c0_11 = arith.constant 0 : index
    %10 = vector.load %arg5[%c0_10, %c0_11] : memref<32x32xf32, #tpu.memory_space<vmem>>, vector<32x32xf32>
    %c0_12 = arith.constant 0 : index
    %c0_13 = arith.constant 0 : index
    %11 = vector.load %arg6[%c0_12, %c0_13] : memref<1x32xf32, #tpu.memory_space<vmem>>, vector<1x32xf32>
    %cst_14 = arith.constant dense<0.000000e+00> : vector<2x32xf32>
    %12 = tpu.matmul %9, %10, %cst_14 {dimension_numbers = #tpu.dot_dimension_numbers<[1], [0], [0], [1], [0, 0, 1, 1], [], []>} : vector<2x32xf32>, vector<32x32xf32>, vector<2x32xf32> -> vector<2x32xf32>
    %13 = vector.broadcast %11 : vector<1x32xf32> to vector<2x32xf32>
    %14 = arith.addf %12, %13 : vector<2x32xf32>
    %cst_15 = arith.constant 0.000000e+00 : f32
    %15 = vector.broadcast %cst_15 : f32 to vector<2x32xf32>
    %16 = arith.maximumf %14, %15 : vector<2x32xf32>
    %c0_16 = arith.constant 0 : index
    %c0_17 = arith.constant 0 : index
    %17 = vector.load %arg7[%c0_16, %c0_17] : memref<8x64xf32, #tpu.memory_space<vmem>>, vector<8x64xf32>
    %c0_18 = arith.constant 0 : index
    %c0_19 = arith.constant 0 : index
    %18 = vector.load %arg8[%c0_18, %c0_19] : memref<32x64xf32, #tpu.memory_space<vmem>>, vector<32x64xf32>
    %c0_20 = arith.constant 0 : index
    %c0_21 = arith.constant 0 : index
    %19 = vector.load %arg9[%c0_20, %c0_21] : memref<1x64xf32, #tpu.memory_space<vmem>>, vector<1x64xf32>
    %cst_22 = arith.constant dense<0.000000e+00> : vector<2x64xf32>
    %20 = tpu.matmul %1, %17, %cst_22 {dimension_numbers = #tpu.dot_dimension_numbers<[1], [0], [0], [1], [0, 0, 1, 1], [], []>} : vector<2x8xf32>, vector<8x64xf32>, vector<2x64xf32> -> vector<2x64xf32>
    %cst_23 = arith.constant dense<0.000000e+00> : vector<2x64xf32>
    %21 = tpu.matmul %16, %18, %cst_23 {dimension_numbers = #tpu.dot_dimension_numbers<[1], [0], [0], [1], [0, 0, 1, 1], [], []>} : vector<2x32xf32>, vector<32x64xf32>, vector<2x64xf32> -> vector<2x64xf32>
    %22 = arith.addf %20, %21 : vector<2x64xf32>
    %23 = vector.broadcast %19 : vector<1x64xf32> to vector<2x64xf32>
    %24 = arith.addf %22, %23 : vector<2x64xf32>
    %cst_24 = arith.constant 0.000000e+00 : f32
    %25 = vector.broadcast %cst_24 : f32 to vector<2x64xf32>
    %26 = arith.maximumf %24, %25 : vector<2x64xf32>
    %27 = vector.broadcast %2 : vector<1x64xf32> to vector<2x64xf32>
    %28 = arith.mulf %26, %27 : vector<2x64xf32>
    %c0_25 = arith.constant 0 : index
    %c0_26 = arith.constant 0 : index
    %29 = vector.load %arg10[%c0_25, %c0_26] : memref<64x32xf32, #tpu.memory_space<vmem>>, vector<64x32xf32>
    %c0_27 = arith.constant 0 : index
    %c0_28 = arith.constant 0 : index
    %30 = vector.load %arg11[%c0_27, %c0_28] : memref<1x32xf32, #tpu.memory_space<vmem>>, vector<1x32xf32>
    %cst_29 = arith.constant dense<0.000000e+00> : vector<2x32xf32>
    %31 = tpu.matmul %28, %29, %cst_29 {dimension_numbers = #tpu.dot_dimension_numbers<[1], [0], [0], [1], [0, 0, 1, 1], [], []>} : vector<2x64xf32>, vector<64x32xf32>, vector<2x32xf32> -> vector<2x32xf32>
    %32 = vector.broadcast %30 : vector<1x32xf32> to vector<2x32xf32>
    %33 = arith.addf %31, %32 : vector<2x32xf32>
    %cst_30 = arith.constant 0.000000e+00 : f32
    %34 = vector.broadcast %cst_30 : f32 to vector<2x32xf32>
    %35 = arith.maximumf %33, %34 : vector<2x32xf32>
    %c0_31 = arith.constant 0 : index
    %c0_32 = arith.constant 0 : index
    %36 = vector.load %arg12[%c0_31, %c0_32] : memref<32x32xf32, #tpu.memory_space<vmem>>, vector<32x32xf32>
    %c0_33 = arith.constant 0 : index
    %c0_34 = arith.constant 0 : index
    %37 = vector.load %arg13[%c0_33, %c0_34] : memref<1x32xf32, #tpu.memory_space<vmem>>, vector<1x32xf32>
    %cst_35 = arith.constant dense<0.000000e+00> : vector<2x32xf32>
    %38 = tpu.matmul %35, %36, %cst_35 {dimension_numbers = #tpu.dot_dimension_numbers<[1], [0], [0], [1], [0, 0, 1, 1], [], []>} : vector<2x32xf32>, vector<32x32xf32>, vector<2x32xf32> -> vector<2x32xf32>
    %39 = vector.broadcast %37 : vector<1x32xf32> to vector<2x32xf32>
    %40 = arith.addf %38, %39 : vector<2x32xf32>
    %cst_36 = arith.constant 0.000000e+00 : f32
    %41 = vector.broadcast %cst_36 : f32 to vector<2x32xf32>
    %42 = arith.maximumf %40, %41 : vector<2x32xf32>
    %c0_37 = arith.constant 0 : index
    %c0_38 = arith.constant 0 : index
    %43 = vector.load %arg14[%c0_37, %c0_38] : memref<32x32xf32, #tpu.memory_space<vmem>>, vector<32x32xf32>
    %c0_39 = arith.constant 0 : index
    %c0_40 = arith.constant 0 : index
    %44 = vector.load %arg15[%c0_39, %c0_40] : memref<1x32xf32, #tpu.memory_space<vmem>>, vector<1x32xf32>
    %cst_41 = arith.constant dense<0.000000e+00> : vector<2x32xf32>
    %45 = tpu.matmul %42, %43, %cst_41 {dimension_numbers = #tpu.dot_dimension_numbers<[1], [0], [0], [1], [0, 0, 1, 1], [], []>} : vector<2x32xf32>, vector<32x32xf32>, vector<2x32xf32> -> vector<2x32xf32>
    %46 = vector.broadcast %44 : vector<1x32xf32> to vector<2x32xf32>
    %47 = arith.addf %45, %46 : vector<2x32xf32>
    %cst_42 = arith.constant 0.000000e+00 : f32
    %48 = vector.broadcast %cst_42 : f32 to vector<2x32xf32>
    %49 = arith.maximumf %47, %48 : vector<2x32xf32>
    %c0_43 = arith.constant 0 : index
    %c0_44 = arith.constant 0 : index
    %50 = vector.load %arg16[%c0_43, %c0_44] : memref<32x4xf32, #tpu.memory_space<vmem>>, vector<32x4xf32>
    %c0_45 = arith.constant 0 : index
    %c0_46 = arith.constant 0 : index
    %51 = vector.load %arg17[%c0_45, %c0_46] : memref<1x4xf32, #tpu.memory_space<vmem>>, vector<1x4xf32>
    %cst_47 = arith.constant dense<0.000000e+00> : vector<2x4xf32>
    %52 = tpu.matmul %16, %50, %cst_47 {dimension_numbers = #tpu.dot_dimension_numbers<[1], [0], [0], [1], [0, 0, 1, 1], [], []>} : vector<2x32xf32>, vector<32x4xf32>, vector<2x4xf32> -> vector<2x4xf32>
    %53 = vector.broadcast %51 : vector<1x4xf32> to vector<2x4xf32>
    %54 = arith.addf %52, %53 : vector<2x4xf32>
    %cst_48 = arith.constant dense<0xFF800000> : vector<2xf32>
    %55 = vector.multi_reduction <maximumf>, %54, %cst_48 [1] : vector<2x4xf32> to vector<2xf32>
    %56 = vector.shape_cast %55 : vector<2xf32> to vector<2x1xf32>
    %57 = vector.broadcast %56 : vector<2x1xf32> to vector<2x4xf32>
    %58 = arith.subf %54, %57 : vector<2x4xf32>
    %59 = math.exp %58 : vector<2x4xf32>
    %cst_49 = arith.constant dense<0.000000e+00> : vector<2xf32>
    %60 = vector.multi_reduction <add>, %59, %cst_49 [1] : vector<2x4xf32> to vector<2xf32>
    %61 = vector.shape_cast %60 : vector<2xf32> to vector<2x1xf32>
    %62 = tpu.reciprocal %61 {approx = true} : vector<2x1xf32> -> vector<2x1xf32>
    %63 = vector.broadcast %62 : vector<2x1xf32> to vector<2x4xf32>
    %64 = arith.mulf %59, %63 : vector<2x4xf32>
    %c0_50 = arith.constant 0 : index
    %c0_51 = arith.constant 0 : index
    %65 = vector.load %arg18[%c0_50, %c0_51] : memref<32x4xf32, #tpu.memory_space<vmem>>, vector<32x4xf32>
    %c0_52 = arith.constant 0 : index
    %c0_53 = arith.constant 0 : index
    %66 = vector.load %arg19[%c0_52, %c0_53] : memref<1x4xf32, #tpu.memory_space<vmem>>, vector<1x4xf32>
    %cst_54 = arith.constant dense<0.000000e+00> : vector<2x4xf32>
    %67 = tpu.matmul %35, %65, %cst_54 {dimension_numbers = #tpu.dot_dimension_numbers<[1], [0], [0], [1], [0, 0, 1, 1], [], []>} : vector<2x32xf32>, vector<32x4xf32>, vector<2x4xf32> -> vector<2x4xf32>
    %68 = vector.broadcast %66 : vector<1x4xf32> to vector<2x4xf32>
    %69 = arith.addf %67, %68 : vector<2x4xf32>
    %cst_55 = arith.constant dense<0xFF800000> : vector<2xf32>
    %70 = vector.multi_reduction <maximumf>, %69, %cst_55 [1] : vector<2x4xf32> to vector<2xf32>
    %71 = vector.shape_cast %70 : vector<2xf32> to vector<2x1xf32>
    %72 = vector.broadcast %71 : vector<2x1xf32> to vector<2x4xf32>
    %73 = arith.subf %69, %72 : vector<2x4xf32>
    %74 = math.exp %73 : vector<2x4xf32>
    %cst_56 = arith.constant dense<0.000000e+00> : vector<2xf32>
    %75 = vector.multi_reduction <add>, %74, %cst_56 [1] : vector<2x4xf32> to vector<2xf32>
    %76 = vector.shape_cast %75 : vector<2xf32> to vector<2x1xf32>
    %77 = tpu.reciprocal %76 {approx = true} : vector<2x1xf32> -> vector<2x1xf32>
    %78 = vector.broadcast %77 : vector<2x1xf32> to vector<2x4xf32>
    %79 = arith.mulf %74, %78 : vector<2x4xf32>
    %c0_57 = arith.constant 0 : index
    %c0_58 = arith.constant 0 : index
    %80 = vector.load %arg20[%c0_57, %c0_58] : memref<32x4xf32, #tpu.memory_space<vmem>>, vector<32x4xf32>
    %c0_59 = arith.constant 0 : index
    %c0_60 = arith.constant 0 : index
    %81 = vector.load %arg21[%c0_59, %c0_60] : memref<1x4xf32, #tpu.memory_space<vmem>>, vector<1x4xf32>
    %cst_61 = arith.constant dense<0.000000e+00> : vector<2x4xf32>
    %82 = tpu.matmul %42, %80, %cst_61 {dimension_numbers = #tpu.dot_dimension_numbers<[1], [0], [0], [1], [0, 0, 1, 1], [], []>} : vector<2x32xf32>, vector<32x4xf32>, vector<2x4xf32> -> vector<2x4xf32>
    %83 = vector.broadcast %81 : vector<1x4xf32> to vector<2x4xf32>
    %84 = arith.addf %82, %83 : vector<2x4xf32>
    %cst_62 = arith.constant dense<0xFF800000> : vector<2xf32>
    %85 = vector.multi_reduction <maximumf>, %84, %cst_62 [1] : vector<2x4xf32> to vector<2xf32>
    %86 = vector.shape_cast %85 : vector<2xf32> to vector<2x1xf32>
    %87 = vector.broadcast %86 : vector<2x1xf32> to vector<2x4xf32>
    %88 = arith.subf %84, %87 : vector<2x4xf32>
    %89 = math.exp %88 : vector<2x4xf32>
    %cst_63 = arith.constant dense<0.000000e+00> : vector<2xf32>
    %90 = vector.multi_reduction <add>, %89, %cst_63 [1] : vector<2x4xf32> to vector<2xf32>
    %91 = vector.shape_cast %90 : vector<2xf32> to vector<2x1xf32>
    %92 = tpu.reciprocal %91 {approx = true} : vector<2x1xf32> -> vector<2x1xf32>
    %93 = vector.broadcast %92 : vector<2x1xf32> to vector<2x4xf32>
    %94 = arith.mulf %89, %93 : vector<2x4xf32>
    %c0_64 = arith.constant 0 : index
    %c0_65 = arith.constant 0 : index
    %95 = vector.load %arg22[%c0_64, %c0_65] : memref<32x4xf32, #tpu.memory_space<vmem>>, vector<32x4xf32>
    %c0_66 = arith.constant 0 : index
    %c0_67 = arith.constant 0 : index
    %96 = vector.load %arg23[%c0_66, %c0_67] : memref<1x4xf32, #tpu.memory_space<vmem>>, vector<1x4xf32>
    %cst_68 = arith.constant dense<0.000000e+00> : vector<2x4xf32>
    %97 = tpu.matmul %49, %95, %cst_68 {dimension_numbers = #tpu.dot_dimension_numbers<[1], [0], [0], [1], [0, 0, 1, 1], [], []>} : vector<2x32xf32>, vector<32x4xf32>, vector<2x4xf32> -> vector<2x4xf32>
    %98 = vector.broadcast %96 : vector<1x4xf32> to vector<2x4xf32>
    %99 = arith.addf %97, %98 : vector<2x4xf32>
    %cst_69 = arith.constant dense<0xFF800000> : vector<2xf32>
    %100 = vector.multi_reduction <maximumf>, %99, %cst_69 [1] : vector<2x4xf32> to vector<2xf32>
    %101 = vector.shape_cast %100 : vector<2xf32> to vector<2x1xf32>
    %102 = vector.broadcast %101 : vector<2x1xf32> to vector<2x4xf32>
    %103 = arith.subf %99, %102 : vector<2x4xf32>
    %104 = math.exp %103 : vector<2x4xf32>
    %cst_70 = arith.constant dense<0.000000e+00> : vector<2xf32>
    %105 = vector.multi_reduction <add>, %104, %cst_70 [1] : vector<2x4xf32> to vector<2xf32>
    %106 = vector.shape_cast %105 : vector<2xf32> to vector<2x1xf32>
    %107 = tpu.reciprocal %106 {approx = true} : vector<2x1xf32> -> vector<2x1xf32>
    %108 = vector.broadcast %107 : vector<2x1xf32> to vector<2x4xf32>
    %109 = arith.mulf %104, %108 : vector<2x4xf32>
    %110 = tpu.concatenate %64, %79, %94, %109 in 1 : vector<2x4xf32>, vector<2x4xf32>, vector<2x4xf32>, vector<2x4xf32> -> vector<2x16xf32>
    %c0_71 = arith.constant 0 : index
    %c0_72 = arith.constant 0 : index
    %111 = vector.load %arg24[%c0_71, %c0_72] : memref<2x16xf32, #tpu.memory_space<vmem>>, vector<2x16xf32>
    tpu.vector_store %arg24[%c0_71, %c0_72], %110 {strides = array<i32>} : memref<2x16xf32, #tpu.memory_space<vmem>>, vector<2x16xf32>,
    return
  }
}

</mosaic_0001>

<llo_original>
// kernel: tpu_custom_call.1
$region0: #{tpu_custom_call.1}
  #allocation0 [shape = 'u32[]', space=smem, size = 0x4, offset = 0x4, fixed_abs, tag = 'smem constant byte address 0x4 - core index']
  #allocation1 [shape = 'u32[144,128]{1,0:T(1,128)}', space=vmem, size = 0x12000, scoped, tag = 'internal scratch']
  %s0 = inlined_call_operand.vmem [shape: f32[2,16], index: 0, kind: input, shape index: {}]
  %s1 = inlined_call_operand.vmem [shape: f32[2,8], index: 1, kind: input, shape index: {}]
  %s2 = inlined_call_operand.vmem [shape: f32[1,64], index: 2, kind: input, shape index: {}]
  %s3 = inlined_call_operand.vmem [shape: f32[16,32], index: 3, kind: input, shape index: {}]
  %s4 = inlined_call_operand.vmem [shape: f32[1,32], index: 4, kind: input, shape index: {}]
  %s5 = inlined_call_operand.vmem [shape: f32[32,32], index: 5, kind: input, shape index: {}]
  %s6 = inlined_call_operand.vmem [shape: f32[1,32], index: 6, kind: input, shape index: {}]
  %s7 = inlined_call_operand.vmem [shape: f32[8,64], index: 7, kind: input, shape index: {}]
  %s8 = inlined_call_operand.vmem [shape: f32[32,64], index: 8, kind: input, shape index: {}]
  %s9 = inlined_call_operand.vmem [shape: f32[1,64], index: 9, kind: input, shape index: {}]
  %s10 = inlined_call_operand.vmem [shape: f32[64,32], index: 10, kind: input, shape index: {}]
  %s11 = inlined_call_operand.vmem [shape: f32[1,32], index: 11, kind: input, shape index: {}]
  %s12 = inlined_call_operand.vmem [shape: f32[32,32], index: 12, kind: input, shape index: {}]
  %s13 = inlined_call_operand.vmem [shape: f32[1,32], index: 13, kind: input, shape index: {}]
  %s14 = inlined_call_operand.vmem [shape: f32[32,32], index: 14, kind: input, shape index: {}]
  %s15 = inlined_call_operand.vmem [shape: f32[1,32], index: 15, kind: input, shape index: {}]
  %s16 = inlined_call_operand.vmem [shape: f32[32,4], index: 16, kind: input, shape index: {}]
  %s17 = inlined_call_operand.vmem [shape: f32[1,4], index: 17, kind: input, shape index: {}]
  %s18 = inlined_call_operand.vmem [shape: f32[32,4], index: 18, kind: input, shape index: {}]
  %s19 = inlined_call_operand.vmem [shape: f32[1,4], index: 19, kind: input, shape index: {}]
  %s20 = inlined_call_operand.vmem [shape: f32[32,4], index: 20, kind: input, shape index: {}]
  %s21 = inlined_call_operand.vmem [shape: f32[1,4], index: 21, kind: input, shape index: {}]
  %s22 = inlined_call_operand.vmem [shape: f32[32,4], index: 22, kind: input, shape index: {}]
  %s23 = inlined_call_operand.vmem [shape: f32[1,4], index: 23, kind: input, shape index: {}]
  %s24 = inlined_call_operand.hbm [shape: f32[2,16], index: 24, kind: output, shape index: {}]
  %s25 = sld [smem:[#allocation0]]
  $region106: #{tpu_custom_call.1} parent=0
    _
  %s27 = ssub.s32 1, %s25
  %s28 = scalar_select 0, %s27, %s25
  $region1: #{tpu_custom_call.1} parent=0
    #allocation2 [shape = 'u8[1024]{0}', space=vmem, size = 0x400, scoped, tag = 'output window, operand 0, single buffered']
    #allocation3 [shape = 's32[1]{0}', space=sflag, size = 0x4, scoped, tag = 'scoped memory for tpu_custom_call.1']
    %29 = vsyncpa [#allocation3], 0
    // Predicated region
    $region2: #{tpu_custom_call.1} parent=1 // pred_check
      _
    $region3: #{tpu_custom_call.1} parent=1 // pred_check_branch
      %31 = sbr.rel (0) target = $region5
    $region4: #{tpu_custom_call.1} parent=1 // pred_region
      _
    $region5: #{tpu_custom_call.1} parent=1 // pred_fallthru
      _
    // Predicated region
    $region6: #{tpu_custom_call.1} parent=1 // pred_check
      _
    $region7: #{tpu_custom_call.1} parent=1 // pred_check_branch
      %33 = sbr.rel (0) target = $region9
    $region8: #{tpu_custom_call.1} parent=1 // pred_region
      _
    $region9: #{tpu_custom_call.1} parent=1 // pred_fallthru
      _
    // Predicated region
    $region10: #{tpu_custom_call.1} parent=1 // pred_check
      _
    $region11: #{tpu_custom_call.1} parent=1 // pred_check_branch
      %35 = sbr.rel (0) target = $region13
    $region12: #{tpu_custom_call.1} parent=1 // pred_region
      _
    $region13: #{tpu_custom_call.1} parent=1 // pred_fallthru
      _
    // Predicated region
    $region14: #{tpu_custom_call.1} parent=1 // pred_check
      _
    $region15: #{tpu_custom_call.1} parent=1 // pred_check_branch
      %37 = sbr.rel (0) target = $region17
    $region16: #{tpu_custom_call.1} parent=1 // pred_region
      _
    $region17: #{tpu_custom_call.1} parent=1 // pred_fallthru
      _
    // Predicated region
    $region18: #{tpu_custom_call.1} parent=1 // pred_check
      _
    $region19: #{tpu_custom_call.1} parent=1 // pred_check_branch
      %39 = sbr.rel (0) target = $region21
    $region20: #{tpu_custom_call.1} parent=1 // pred_region
      _
    $region21: #{tpu_custom_call.1} parent=1 // pred_fallthru
      _
    // Predicated region
    $region22: #{tpu_custom_call.1} parent=1 // pred_check
      _
    $region23: #{tpu_custom_call.1} parent=1 // pred_check_branch
      %41 = sbr.rel (0) target = $region25
    $region24: #{tpu_custom_call.1} parent=1 // pred_region
      _
    $region25: #{tpu_custom_call.1} parent=1 // pred_fallthru
      _
    // Predicated region
    $region26: #{tpu_custom_call.1} parent=1 // pred_check
      _
    $region27: #{tpu_custom_call.1} parent=1 // pred_check_branch
      %43 = sbr.rel (0) target = $region29
    $region28: #{tpu_custom_call.1} parent=1 // pred_region
      _
    $region29: #{tpu_custom_call.1} parent=1 // pred_fallthru
      _
    // Predicated region
    $region30: #{tpu_custom_call.1} parent=1 // pred_check
      _
    $region31: #{tpu_custom_call.1} parent=1 // pred_check_branch
      %45 = sbr.rel (0) target = $region33
    $region32: #{tpu_custom_call.1} parent=1 // pred_region
      _
    $region33: #{tpu_custom_call.1} parent=1 // pred_fallthru
      _
    // Predicated region
    $region34: #{tpu_custom_call.1} parent=1 // pred_check
      _
    $region35: #{tpu_custom_call.1} parent=1 // pred_check_branch
      %47 = sbr.rel (0) target = $region37
    $region36: #{tpu_custom_call.1} parent=1 // pred_region
      _
    $region37: #{tpu_custom_call.1} parent=1 // pred_fallthru
      _
    // Predicated region
    $region38: #{tpu_custom_call.1} parent=1 // pred_check
      _
    $region39: #{tpu_custom_call.1} parent=1 // pred_check_branch
      %49 = sbr.rel (0) target = $region41
    $region40: #{tpu_custom_call.1} parent=1 // pred_region
      _
    $region41: #{tpu_custom_call.1} parent=1 // pred_fallthru
      _
    // Predicated region
    $region42: #{tpu_custom_call.1} parent=1 // pred_check
      _
    $region43: #{tpu_custom_call.1} parent=1 // pred_check_branch
      %51 = sbr.rel (0) target = $region45
    $region44: #{tpu_custom_call.1} parent=1 // pred_region
      _
    $region45: #{tpu_custom_call.1} parent=1 // pred_fallthru
      _
    // Predicated region
    $region46: #{tpu_custom_call.1} parent=1 // pred_check
      _
    $region47: #{tpu_custom_call.1} parent=1 // pred_check_branch
      %53 = sbr.rel (0) target = $region49
    $region48: #{tpu_custom_call.1} parent=1 // pred_region
      _
    $region49: #{tpu_custom_call.1} parent=1 // pred_fallthru
      _
    // Predicated region
    $region50: #{tpu_custom_call.1} parent=1 // pred_check
      _
    $region51: #{tpu_custom_call.1} parent=1 // pred_check_branch
      %55 = sbr.rel (0) target = $region53
    $region52: #{tpu_custom_call.1} parent=1 // pred_region
      _
    $region53: #{tpu_custom_call.1} parent=1 // pred_fallthru
      _
    // Predicated region
    $region54: #{tpu_custom_call.1} parent=1 // pred_check
      _
    $region55: #{tpu_custom_call.1} parent=1 // pred_check_branch
      %57 = sbr.rel (0) target = $region57
    $region56: #{tpu_custom_call.1} parent=1 // pred_region
      _
    $region57: #{tpu_custom_call.1} parent=1 // pred_fallthru
      _
    // Predicated region
    $region58: #{tpu_custom_call.1} parent=1 // pred_check
      _
    $region59: #{tpu_custom_call.1} parent=1 // pred_check_branch
      %59 = sbr.rel (0) target = $region61
    $region60: #{tpu_custom_call.1} parent=1 // pred_region
      _
    $region61: #{tpu_custom_call.1} parent=1 // pred_fallthru
      _
    // Predicated region
    $region62: #{tpu_custom_call.1} parent=1 // pred_check
      _
    $region63: #{tpu_custom_call.1} parent=1 // pred_check_branch
      %61 = sbr.rel (0) target = $region65
    $region64: #{tpu_custom_call.1} parent=1 // pred_region
      _
    $region65: #{tpu_custom_call.1} parent=1 // pred_fallthru
      _
    // Predicated region
    $region66: #{tpu_custom_call.1} parent=1 // pred_check
      _
    $region67: #{tpu_custom_call.1} parent=1 // pred_check_branch
      %63 = sbr.rel (0) target = $region69
    $region68: #{tpu_custom_call.1} parent=1 // pred_region
      _
    $region69: #{tpu_custom_call.1} parent=1 // pred_fallthru
      _
    // Predicated region
    $region70: #{tpu_custom_call.1} parent=1 // pred_check
      _
    $region71: #{tpu_custom_call.1} parent=1 // pred_check_branch
      %65 = sbr.rel (0) target = $region73
    $region72: #{tpu_custom_call.1} parent=1 // pred_region
      _
    $region73: #{tpu_custom_call.1} parent=1 // pred_fallthru
      _
    // Predicated region
    $region74: #{tpu_custom_call.1} parent=1 // pred_check
      _
    $region75: #{tpu_custom_call.1} parent=1 // pred_check_branch
      %67 = sbr.rel (0) target = $region77
    $region76: #{tpu_custom_call.1} parent=1 // pred_region
      _
    $region77: #{tpu_custom_call.1} parent=1 // pred_fallthru
      _
    // Predicated region
    $region78: #{tpu_custom_call.1} parent=1 // pred_check
      _
    $region79: #{tpu_custom_call.1} parent=1 // pred_check_branch
      %69 = sbr.rel (0) target = $region81
    $region80: #{tpu_custom_call.1} parent=1 // pred_region
      _
    $region81: #{tpu_custom_call.1} parent=1 // pred_fallthru
      _
    // Predicated region
    $region82: #{tpu_custom_call.1} parent=1 // pred_check
      _
    $region83: #{tpu_custom_call.1} parent=1 // pred_check_branch
      %71 = sbr.rel (0) target = $region85
    $region84: #{tpu_custom_call.1} parent=1 // pred_region
      _
    $region85: #{tpu_custom_call.1} parent=1 // pred_fallthru
      _
    // Predicated region
    $region86: #{tpu_custom_call.1} parent=1 // pred_check
      _
    $region87: #{tpu_custom_call.1} parent=1 // pred_check_branch
      %73 = sbr.rel (0) target = $region89
    $region88: #{tpu_custom_call.1} parent=1 // pred_region
      _
    $region89: #{tpu_custom_call.1} parent=1 // pred_fallthru
      _
    // Predicated region
    $region90: #{tpu_custom_call.1} parent=1 // pred_check
      _
    $region91: #{tpu_custom_call.1} parent=1 // pred_check_branch
      %75 = sbr.rel (0) target = $region93
    $region92: #{tpu_custom_call.1} parent=1 // pred_region
      _
    $region93: #{tpu_custom_call.1} parent=1 // pred_fallthru
      _
    // Predicated region
    $region94: #{tpu_custom_call.1} parent=1 // pred_check
      _
    $region95: #{tpu_custom_call.1} parent=1 // pred_check_branch
      %77 = sbr.rel (0) target = $region97
    $region96: #{tpu_custom_call.1} parent=1 // pred_region
      _
    $region97: #{tpu_custom_call.1} parent=1 // pred_fallthru
      _
    %v78 = vld [vmem:[%s0] sm:$0x3]
    %v79 = vld [vmem:[%s1] sm:$0x3]
    %v80 = vld [vmem:[%s2] sm:$0x1]
    %v81 = vld [vmem:[%s3] sm:$0xff]
    %v82 = vld [vmem:[%s3 + $0x8] sm:$0xff]
    %v83 = vld [vmem:[%s4] sm:$0x1]
    %v85 = vlaneseq
    %v86 = vshrl.u32 %v85, 7
    %v87 = vsub.s32 0, %v86
    %v88 = vrot.slane %v83, %v87
    %vm90 = vcmask 130048
    %v92 = vsel %vm90, %v78, 0
    %94 = vmatprep.subr.mxu0 0.0
    %95 = vmatpush1.msra.mxu0 %v81
    %96 = vmatprep.subr.mxu0 0.0
    %97 = vmatpush1.msra.mxu0 %v82
    %98 = vmatprep.subr.mxu0 0.0
    %99 = vmatpush1.msra.mxu0 0.0
    %100 = vmatprep.subr.mxu0 0.0
    %101 = vmatpush1.msra.mxu0 0.0
    %102 = vmatprep.subr.mxu0 0.0
    %103 = vmatpush1.msra.mxu0 0.0
    %104 = vmatprep.subr.mxu0 0.0
    %105 = vmatpush1.msra.mxu0 0.0
    %106 = vmatprep.subr.mxu0 0.0
    %107 = vmatpush1.msra.mxu0 0.0
    %108 = vmatprep.subr.mxu0 0.0
    %109 = vmatpush1.msra.mxu0 0.0
    %110 = vmatprep.subr.mxu0 0.0
    %111 = vmatpush1.msra.mxu0 0.0
    %112 = vmatprep.subr.mxu0 0.0
    %113 = vmatpush1.msra.mxu0 0.0
    %114 = vmatprep.subr.mxu0 0.0
    %115 = vmatpush1.msra.mxu0 0.0
    %116 = vmatprep.subr.mxu0 0.0
    %117 = vmatpush1.msra.mxu0 0.0
    %118 = vmatprep.subr.mxu0 0.0
    %119 = vmatpush1.msra.mxu0 0.0
    %120 = vmatprep.subr.mxu0 0.0
    %121 = vmatpush1.msra.mxu0 0.0
    %122 = vmatprep.subr.mxu0 0.0
    %123 = vmatpush1.msra.mxu0 0.0
    %124 = vmatprep.subr.mxu0 0.0
    %125 = vmatpush1.msra.mxu0 0.0
    %126 = vmatprep.subr.mxu0 0.0
    %127 = vmatpush1.msra.mxu0 0.0
    %128 = vmatprep.subr.mxu0 0.0
    %129 = vmatpush1.msra.mxu0 0.0
    %130 = vmatprep.subr.mxu0 0.0
    %131 = vmatpush1.msra.mxu0 0.0
    %132 = vmatprep.subr.mxu0 0.0
    %133 = vmatpush1.msra.mxu0 0.0
    %134 = vmatprep.subr.mxu0 0.0
    %135 = vmatpush1.msra.mxu0 0.0
    %136 = vmatprep.subr.mxu0 0.0
    %137 = vmatpush1.msra.mxu0 0.0
    %138 = vmatprep.subr.mxu0 0.0
    %139 = vmatpush1.msra.mxu0 0.0
    %140 = vmatprep.subr.mxu0 0.0
    %141 = vmatpush1.msra.mxu0 0.0
    %142 = vmatprep.subr.mxu0 0.0
    %143 = vmatpush1.msra.mxu0 0.0
    %144 = vmatprep.subr.mxu0 0.0
    %145 = vmatpush1.msra.mxu0 0.0
    %146 = vmatprep.subr.mxu0 0.0
    %147 = vmatpush1.msra.mxu0 0.0
    %148 = vmatprep.subr.mxu0 0.0
    %149 = vmatpush1.msra.mxu0 0.0
    %150 = vmatprep.subr.mxu0 0.0
    %151 = vmatpush1.msra.mxu0 0.0
    %152 = vmatprep.subr.mxu0 0.0
    %153 = vmatpush1.msra.mxu0 0.0
    %154 = vmatprep.subr.mxu0 0.0
    %155 = vmatpush1.msra.mxu0 0.0
    %156 = vmatprep.subr.mxu0 0.0
    %157 = vmatpush1.msra.mxu0 0.0
    %158 = vmatprep.mubr.f32.mxu0 0.0
    %159 = vmatmul.mubr.f32.gmra.mrb[0].mxu0 %v92
    %v160 = vpop.f32.mrb[0].mxu0
    %v161 = vadd.f32 %v88, %v160
    %v162 = vpop.f32.mrb[0].mxu0
    %163 = vdwg.mxu0
    %v164 = vmax.f32 %v161, 0.0
    %v165 = vld [vmem:[%s5] sm:$0xff]
    %v166 = vld [vmem:[%s5 + $0x8] sm:$0xff]
    %v167 = vld [vmem:[%s5 + $0x10] sm:$0xff]
    %v168 = vld [vmem:[%s5 + $0x18] sm:$0xff]
    %v169 = vld [vmem:[%s6] sm:$0x1]
    %v171 = vlaneseq
    %v172 = vshrl.u32 %v171, 7
    %v173 = vsub.s32 0, %v172
    %v174 = vrot.slane %v169, %v173
    %vm176 = vcmask 261120
    %v178 = vsel %vm176, %v164, 0
    %180 = vmatprep.subr.mxu0 0.0
    %181 = vmatpush1.msra.mxu0 %v165
    %182 = vmatprep.subr.mxu0 0.0
    %183 = vmatpush1.msra.mxu0 %v166
    %184 = vmatprep.subr.mxu0 0.0
    %185 = vmatpush1.msra.mxu0 %v167
    %186 = vmatprep.subr.mxu0 0.0
    %187 = vmatpush1.msra.mxu0 %v168
    %188 = vmatprep.subr.mxu0 0.0
    %189 = vmatpush1.msra.mxu0 0.0
    %190 = vmatprep.subr.mxu0 0.0
    %191 = vmatpush1.msra.mxu0 0.0
    %192 = vmatprep.subr.mxu0 0.0
    %193 = vmatpush1.msra.mxu0 0.0
    %194 = vmatprep.subr.mxu0 0.0
    %195 = vmatpush1.msra.mxu0 0.0
    %196 = vmatprep.subr.mxu0 0.0
    %197 = vmatpush1.msra.mxu0 0.0
    %198 = vmatprep.subr.mxu0 0.0
    %199 = vmatpush1.msra.mxu0 0.0
    %200 = vmatprep.subr.mxu0 0.0
    %201 = vmatpush1.msra.mxu0 0.0
    %202 = vmatprep.subr.mxu0 0.0
    %203 = vmatpush1.msra.mxu0 0.0
    %204 = vmatprep.subr.mxu0 0.0
    %205 = vmatpush1.msra.mxu0 0.0
    %206 = vmatprep.subr.mxu0 0.0
    %207 = vmatpush1.msra.mxu0 0.0
    %208 = vmatprep.subr.mxu0 0.0
    %209 = vmatpush1.msra.mxu0 0.0
    %210 = vmatprep.subr.mxu0 0.0
    %211 = vmatpush1.msra.mxu0 0.0
    %212 = vmatprep.subr.mxu0 0.0
    %213 = vmatpush1.msra.mxu0 0.0
    %214 = vmatprep.subr.mxu0 0.0
    %215 = vmatpush1.msra.mxu0 0.0
    %216 = vmatprep.subr.mxu0 0.0
    %217 = vmatpush1.msra.mxu0 0.0
    %218 = vmatprep.subr.mxu0 0.0
    %219 = vmatpush1.msra.mxu0 0.0
    %220 = vmatprep.subr.mxu0 0.0
    %221 = vmatpush1.msra.mxu0 0.0
    %222 = vmatprep.subr.mxu0 0.0
    %223 = vmatpush1.msra.mxu0 0.0
    %224 = vmatprep.subr.mxu0 0.0
    %225 = vmatpush1.msra.mxu0 0.0
    %226 = vmatprep.subr.mxu0 0.0
    %227 = vmatpush1.msra.mxu0 0.0
    %228 = vmatprep.subr.mxu0 0.0
    %229 = vmatpush1.msra.mxu0 0.0
    %230 = vmatprep.subr.mxu0 0.0
    %231 = vmatpush1.msra.mxu0 0.0
    %232 = vmatprep.subr.mxu0 0.0
    %233 = vmatpush1.msra.mxu0 0.0
    %234 = vmatprep.subr.mxu0 0.0
    %235 = vmatpush1.msra.mxu0 0.0
    %236 = vmatprep.subr.mxu0 0.0
    %237 = vmatpush1.msra.mxu0 0.0
    %238 = vmatprep.subr.mxu0 0.0
    %239 = vmatpush1.msra.mxu0 0.0
    %240 = vmatprep.subr.mxu0 0.0
    %241 = vmatpush1.msra.mxu0 0.0
    %242 = vmatprep.subr.mxu0 0.0
    %243 = vmatpush1.msra.mxu0 0.0
    %244 = vmatprep.mubr.f32.mxu0 0.0
    %245 = vmatmul.mubr.f32.gmra.mrb[0].mxu0 %v178
    %v246 = vpop.f32.mrb[0].mxu0
    %v247 = vadd.f32 %v174, %v246
    %v248 = vpop.f32.mrb[0].mxu0
    %249 = vdwg.mxu0
    %v250 = vmax.f32 %v247, 0.0
    %v251 = vld [vmem:[%s7] sm:$0xff]
    %v252 = vld [vmem:[%s8] sm:$0xff]
    %v253 = vld [vmem:[%s8 + $0x8] sm:$0xff]
    %v254 = vld [vmem:[%s8 + $0x10] sm:$0xff]
    %v255 = vld [vmem:[%s8 + $0x18] sm:$0xff]
    %v256 = vld [vmem:[%s9] sm:$0x1]
    %v258 = vsel %vm176, %v250, 0
    %260 = vmatprep.subr.mxu0 0.0
    %261 = vmatpush1.msra.mxu0 %v252
    %262 = vmatprep.subr.mxu0 0.0
    %263 = vmatpush1.msra.mxu0 %v253
    %264 = vmatprep.subr.mxu0 0.0
    %265 = vmatpush1.msra.mxu0 %v254
    %266 = vmatprep.subr.mxu0 0.0
    %267 = vmatpush1.msra.mxu0 %v255
    %268 = vmatprep.subr.mxu0 0.0
    %269 = vmatpush1.msra.mxu0 0.0
    %270 = vmatprep.subr.mxu0 0.0
    %271 = vmatpush1.msra.mxu0 0.0
    %272 = vmatprep.subr.mxu0 0.0
    %273 = vmatpush1.msra.mxu0 0.0
    %274 = vmatprep.subr.mxu0 0.0
    %275 = vmatpush1.msra.mxu0 0.0
    %276 = vmatprep.subr.mxu0 0.0
    %277 = vmatpush1.msra.mxu0 0.0
    %278 = vmatprep.subr.mxu0 0.0
    %279 = vmatpush1.msra.mxu0 0.0
    %280 = vmatprep.subr.mxu0 0.0
    %281 = vmatpush1.msra.mxu0 0.0
    %282 = vmatprep.subr.mxu0 0.0
    %283 = vmatpush1.msra.mxu0 0.0
    %284 = vmatprep.subr.mxu0 0.0
    %285 = vmatpush1.msra.mxu0 0.0
    %286 = vmatprep.subr.mxu0 0.0
    %287 = vmatpush1.msra.mxu0 0.0
    %288 = vmatprep.subr.mxu0 0.0
    %289 = vmatpush1.msra.mxu0 0.0
    %290 = vmatprep.subr.mxu0 0.0
    %291 = vmatpush1.msra.mxu0 0.0
    %292 = vmatprep.subr.mxu0 0.0
    %293 = vmatpush1.msra.mxu0 0.0
    %294 = vmatprep.subr.mxu0 0.0
    %295 = vmatpush1.msra.mxu0 0.0
    %296 = vmatprep.subr.mxu0 0.0
    %297 = vmatpush1.msra.mxu0 0.0
    %298 = vmatprep.subr.mxu0 0.0
    %299 = vmatpush1.msra.mxu0 0.0
    %300 = vmatprep.subr.mxu0 0.0
    %301 = vmatpush1.msra.mxu0 0.0
    %302 = vmatprep.subr.mxu0 0.0
    %303 = vmatpush1.msra.mxu0 0.0
    %304 = vmatprep.subr.mxu0 0.0
    %305 = vmatpush1.msra.mxu0 0.0
    %306 = vmatprep.subr.mxu0 0.0
    %307 = vmatpush1.msra.mxu0 0.0
    %308 = vmatprep.subr.mxu0 0.0
    %309 = vmatpush1.msra.mxu0 0.0
    %310 = vmatprep.subr.mxu0 0.0
    %311 = vmatpush1.msra.mxu0 0.0
    %312 = vmatprep.subr.mxu0 0.0
    %313 = vmatpush1.msra.mxu0 0.0
    %314 = vmatprep.subr.mxu0 0.0
    %315 = vmatpush1.msra.mxu0 0.0
    %316 = vmatprep.subr.mxu0 0.0
    %317 = vmatpush1.msra.mxu0 0.0
    %318 = vmatprep.subr.mxu0 0.0
    %319 = vmatpush1.msra.mxu0 0.0
    %320 = vmatprep.subr.mxu0 0.0
    %321 = vmatpush1.msra.mxu0 0.0
    %322 = vmatprep.subr.mxu0 0.0
    %323 = vmatpush1.msra.mxu0 0.0
    %324 = vmatprep.mubr.f32.mxu0 0.0
    %325 = vmatmul.mubr.f32.gmra.mrb[0].mxu0 %v258
    %v326 = vpop.f32.mrb[0].mxu0
    %v327 = vadd.f32 0.0, %v326
    %v328 = vpop.f32.mrb[0].mxu0
    %329 = vdwg.mxu0
    %vm330 = vcmask 64512
    %v332 = vsel %vm330, %v79, 0
    %334 = vmatprep.subr.mxu0 0.0
    %335 = vmatpush1.msra.mxu0 %v251
    %336 = vmatprep.subr.mxu0 0.0
    %337 = vmatpush1.msra.mxu0 0.0
    %338 = vmatprep.subr.mxu0 0.0
    %339 = vmatpush1.msra.mxu0 0.0
    %340 = vmatprep.subr.mxu0 0.0
    %341 = vmatpush1.msra.mxu0 0.0
    %342 = vmatprep.subr.mxu0 0.0
    %343 = vmatpush1.msra.mxu0 0.0
    %344 = vmatprep.subr.mxu0 0.0
    %345 = vmatpush1.msra.mxu0 0.0
    %346 = vmatprep.subr.mxu0 0.0
    %347 = vmatpush1.msra.mxu0 0.0
    %348 = vmatprep.subr.mxu0 0.0
    %349 = vmatpush1.msra.mxu0 0.0
    %350 = vmatprep.subr.mxu0 0.0
    %351 = vmatpush1.msra.mxu0 0.0
    %352 = vmatprep.subr.mxu0 0.0
    %353 = vmatpush1.msra.mxu0 0.0
    %354 = vmatprep.subr.mxu0 0.0
    %355 = vmatpush1.msra.mxu0 0.0
    %356 = vmatprep.subr.mxu0 0.0
    %357 = vmatpush1.msra.mxu0 0.0
    %358 = vmatprep.subr.mxu0 0.0
    %359 = vmatpush1.msra.mxu0 0.0
    %360 = vmatprep.subr.mxu0 0.0
    %361 = vmatpush1.msra.mxu0 0.0
    %362 = vmatprep.subr.mxu0 0.0
    %363 = vmatpush1.msra.mxu0 0.0
    %364 = vmatprep.subr.mxu0 0.0
    %365 = vmatpush1.msra.mxu0 0.0
    %366 = vmatprep.subr.mxu0 0.0
    %367 = vmatpush1.msra.mxu0 0.0
    %368 = vmatprep.subr.mxu0 0.0
    %369 = vmatpush1.msra.mxu0 0.0
    %370 = vmatprep.subr.mxu0 0.0
    %371 = vmatpush1.msra.mxu0 0.0
    %372 = vmatprep.subr.mxu0 0.0
    %373 = vmatpush1.msra.mxu0 0.0
    %374 = vmatprep.subr.mxu0 0.0
    %375 = vmatpush1.msra.mxu0 0.0
    %376 = vmatprep.subr.mxu0 0.0
    %377 = vmatpush1.msra.mxu0 0.0
    %378 = vmatprep.subr.mxu0 0.0
    %379 = vmatpush1.msra.mxu0 0.0
    %380 = vmatprep.subr.mxu0 0.0
    %381 = vmatpush1.msra.mxu0 0.0
    %382 = vmatprep.subr.mxu0 0.0
    %383 = vmatpush1.msra.mxu0 0.0
    %384 = vmatprep.subr.mxu0 0.0
    %385 = vmatpush1.msra.mxu0 0.0
    %386 = vmatprep.subr.mxu0 0.0
    %387 = vmatpush1.msra.mxu0 0.0
    %388 = vmatprep.subr.mxu0 0.0
    %389 = vmatpush1.msra.mxu0 0.0
    %390 = vmatprep.subr.mxu0 0.0
    %391 = vmatpush1.msra.mxu0 0.0
    %392 = vmatprep.subr.mxu0 0.0
    %393 = vmatpush1.msra.mxu0 0.0
    %394 = vmatprep.subr.mxu0 0.0
    %395 = vmatpush1.msra.mxu0 0.0
    %396 = vmatprep.subr.mxu0 0.0
    %397 = vmatpush1.msra.mxu0 0.0
    %398 = vmatprep.mubr.f32.mxu0 0.0
    %399 = vmatmul.mubr.f32.gmra.mrb[0].mxu0 %v332
    %v400 = vpop.f32.mrb[0].mxu0
    %v401 = vadd.f32 %v327, %v400
    %v402 = vpop.f32.mrb[0].mxu0
    %403 = vdwg.mxu0
    %v405 = vlaneseq
    %v406 = vshrl.u32 %v405, 7
    %v407 = vsub.s32 0, %v406
    %v408 = vrot.slane %v256, %v407
    %v410 = vadd.f32 %v401, %v408
    %v411 = vmax.f32 %v410, 0.0
    %v413 = vlaneseq
    %v414 = vshrl.u32 %v413, 7
    %v415 = vsub.s32 0, %v414
    %v416 = vrot.slane %v80, %v415
    %v418 = vmul.f32 %v411, %v416
    %v419 = vld [vmem:[%s10] sm:$0xff]
    %v420 = vld [vmem:[%s10 + $0x8] sm:$0xff]
    %v421 = vld [vmem:[%s10 + $0x10] sm:$0xff]
    %v422 = vld [vmem:[%s10 + $0x18] sm:$0xff]
    %v423 = vld [vmem:[%s10 + $0x20] sm:$0xff]
    %v424 = vld [vmem:[%s10 + $0x28] sm:$0xff]
    %v425 = vld [vmem:[%s10 + $0x30] sm:$0xff]
    %v426 = vld [vmem:[%s10 + $0x38] sm:$0xff]
    %v427 = vld [vmem:[%s11] sm:$0x1]
    %v429 = vlaneseq
    %v430 = vshrl.u32 %v429, 7
    %v431 = vsub.s32 0, %v430
    %v432 = vrot.slane %v427, %v431
    %vm434 = vcmask 523264
    %v436 = vsel %vm434, %v418, 0
    %438 = vmatprep.subr.mxu0 0.0
    %439 = vmatpush1.msra.mxu0 %v419
    %440 = vmatprep.subr.mxu0 0.0
    %441 = vmatpush1.msra.mxu0 %v420
    %442 = vmatprep.subr.mxu0 0.0
    %443 = vmatpush1.msra.mxu0 %v421
    %444 = vmatprep.subr.mxu0 0.0
    %445 = vmatpush1.msra.mxu0 %v422
    %446 = vmatprep.subr.mxu0 0.0
    %447 = vmatpush1.msra.mxu0 %v423
    %448 = vmatprep.subr.mxu0 0.0
    %449 = vmatpush1.msra.mxu0 %v424
    %450 = vmatprep.subr.mxu0 0.0
    %451 = vmatpush1.msra.mxu0 %v425
    %452 = vmatprep.subr.mxu0 0.0
    %453 = vmatpush1.msra.mxu0 %v426
    %454 = vmatprep.subr.mxu0 0.0
    %455 = vmatpush1.msra.mxu0 0.0
    %456 = vmatprep.subr.mxu0 0.0
    %457 = vmatpush1.msra.mxu0 0.0
    %458 = vmatprep.subr.mxu0 0.0
    %459 = vmatpush1.msra.mxu0 0.0
    %460 = vmatprep.subr.mxu0 0.0
    %461 = vmatpush1.msra.mxu0 0.0
    %462 = vmatprep.subr.mxu0 0.0
    %463 = vmatpush1.msra.mxu0 0.0
    %464 = vmatprep.subr.mxu0 0.0
    %465 = vmatpush1.msra.mxu0 0.0
    %466 = vmatprep.subr.mxu0 0.0
    %467 = vmatpush1.msra.mxu0 0.0
    %468 = vmatprep.subr.mxu0 0.0
    %469 = vmatpush1.msra.mxu0 0.0
    %470 = vmatprep.subr.mxu0 0.0
    %471 = vmatpush1.msra.mxu0 0.0
    %472 = vmatprep.subr.mxu0 0.0
    %473 = vmatpush1.msra.mxu0 0.0
    %474 = vmatprep.subr.mxu0 0.0
    %475 = vmatpush1.msra.mxu0 0.0
    %476 = vmatprep.subr.mxu0 0.0
    %477 = vmatpush1.msra.mxu0 0.0
    %478 = vmatprep.subr.mxu0 0.0
    %479 = vmatpush1.msra.mxu0 0.0
    %480 = vmatprep.subr.mxu0 0.0
    %481 = vmatpush1.msra.mxu0 0.0
    %482 = vmatprep.subr.mxu0 0.0
    %483 = vmatpush1.msra.mxu0 0.0
    %484 = vmatprep.subr.mxu0 0.0
    %485 = vmatpush1.msra.mxu0 0.0
    %486 = vmatprep.subr.mxu0 0.0
    %487 = vmatpush1.msra.mxu0 0.0
    %488 = vmatprep.subr.mxu0 0.0
    %489 = vmatpush1.msra.mxu0 0.0
    %490 = vmatprep.subr.mxu0 0.0
    %491 = vmatpush1.msra.mxu0 0.0
    %492 = vmatprep.subr.mxu0 0.0
    %493 = vmatpush1.msra.mxu0 0.0
    %494 = vmatprep.subr.mxu0 0.0
    %495 = vmatpush1.msra.mxu0 0.0
    %496 = vmatprep.subr.mxu0 0.0
    %497 = vmatpush1.msra.mxu0 0.0
    %498 = vmatprep.subr.mxu0 0.0
    %499 = vmatpush1.msra.mxu0 0.0
    %500 = vmatprep.subr.mxu0 0.0
    %501 = vmatpush1.msra.mxu0 0.0
    %502 = vmatprep.mubr.f32.mxu0 0.0
    %503 = vmatmul.mubr.f32.gmra.mrb[0].mxu0 %v436
    %v504 = vpop.f32.mrb[0].mxu0
    %v505 = vadd.f32 %v432, %v504
    %v506 = vpop.f32.mrb[0].mxu0
    %507 = vdwg.mxu0
    %v508 = vmax.f32 %v505, 0.0
    %v509 = vld [vmem:[%s12] sm:$0xff]
    %v510 = vld [vmem:[%s12 + $0x8] sm:$0xff]
    %v511 = vld [vmem:[%s12 + $0x10] sm:$0xff]
    %v512 = vld [vmem:[%s12 + $0x18] sm:$0xff]
    %v513 = vld [vmem:[%s13] sm:$0x1]
    %v515 = vlaneseq
    %v516 = vshrl.u32 %v515, 7
    %v517 = vsub.s32 0, %v516
    %v518 = vrot.slane %v513, %v517
    %v521 = vsel %vm176, %v508, 0
    %523 = vmatprep.subr.mxu0 0.0
    %524 = vmatpush1.msra.mxu0 %v509
    %525 = vmatprep.subr.mxu0 0.0
    %526 = vmatpush1.msra.mxu0 %v510
    %527 = vmatprep.subr.mxu0 0.0
    %528 = vmatpush1.msra.mxu0 %v511
    %529 = vmatprep.subr.mxu0 0.0
    %530 = vmatpush1.msra.mxu0 %v512
    %531 = vmatprep.subr.mxu0 0.0
    %532 = vmatpush1.msra.mxu0 0.0
    %533 = vmatprep.subr.mxu0 0.0
    %534 = vmatpush1.msra.mxu0 0.0
    %535 = vmatprep.subr.mxu0 0.0
    %536 = vmatpush1.msra.mxu0 0.0
    %537 = vmatprep.subr.mxu0 0.0
    %538 = vmatpush1.msra.mxu0 0.0
    %539 = vmatprep.subr.mxu0 0.0
    %540 = vmatpush1.msra.mxu0 0.0
    %541 = vmatprep.subr.mxu0 0.0
    %542 = vmatpush1.msra.mxu0 0.0
    %543 = vmatprep.subr.mxu0 0.0
    %544 = vmatpush1.msra.mxu0 0.0
    %545 = vmatprep.subr.mxu0 0.0
    %546 = vmatpush1.msra.mxu0 0.0
    %547 = vmatprep.subr.mxu0 0.0
    %548 = vmatpush1.msra.mxu0 0.0
    %549 = vmatprep.subr.mxu0 0.0
    %550 = vmatpush1.msra.mxu0 0.0
    %551 = vmatprep.subr.mxu0 0.0
    %552 = vmatpush1.msra.mxu0 0.0
    %553 = vmatprep.subr.mxu0 0.0
    %554 = vmatpush1.msra.mxu0 0.0
    %555 = vmatprep.subr.mxu0 0.0
    %556 = vmatpush1.msra.mxu0 0.0
    %557 = vmatprep.subr.mxu0 0.0
    %558 = vmatpush1.msra.mxu0 0.0
    %559 = vmatprep.subr.mxu0 0.0
    %560 = vmatpush1.msra.mxu0 0.0
    %561 = vmatprep.subr.mxu0 0.0
    %562 = vmatpush1.msra.mxu0 0.0
    %563 = vmatprep.subr.mxu0 0.0
    %564 = vmatpush1.msra.mxu0 0.0
    %565 = vmatprep.subr.mxu0 0.0
    %566 = vmatpush1.msra.mxu0 0.0
    %567 = vmatprep.subr.mxu0 0.0
    %568 = vmatpush1.msra.mxu0 0.0
    %569 = vmatprep.subr.mxu0 0.0
    %570 = vmatpush1.msra.mxu0 0.0
    %571 = vmatprep.subr.mxu0 0.0
    %572 = vmatpush1.msra.mxu0 0.0
    %573 = vmatprep.subr.mxu0 0.0
    %574 = vmatpush1.msra.mxu0 0.0
    %575 = vmatprep.subr.mxu0 0.0
    %576 = vmatpush1.msra.mxu0 0.0
    %577 = vmatprep.subr.mxu0 0.0
    %578 = vmatpush1.msra.mxu0 0.0
    %579 = vmatprep.subr.mxu0 0.0
    %580 = vmatpush1.msra.mxu0 0.0
    %581 = vmatprep.subr.mxu0 0.0
    %582 = vmatpush1.msra.mxu0 0.0
    %583 = vmatprep.subr.mxu0 0.0
    %584 = vmatpush1.msra.mxu0 0.0
    %585 = vmatprep.subr.mxu0 0.0
    %586 = vmatpush1.msra.mxu0 0.0
    %587 = vmatprep.mubr.f32.mxu0 0.0
    %588 = vmatmul.mubr.f32.gmra.mrb[0].mxu0 %v521
    %v589 = vpop.f32.mrb[0].mxu0
    %v590 = vadd.f32 %v518, %v589
    %v591 = vpop.f32.mrb[0].mxu0
    %592 = vdwg.mxu0
    %v593 = vmax.f32 %v590, 0.0
    %v594 = vld [vmem:[%s14] sm:$0xff]
    %v595 = vld [vmem:[%s14 + $0x8] sm:$0xff]
    %v596 = vld [vmem:[%s14 + $0x10] sm:$0xff]
    %v597 = vld [vmem:[%s14 + $0x18] sm:$0xff]
    %v598 = vld [vmem:[%s15] sm:$0x1]
    %v600 = vlaneseq
    %v601 = vshrl.u32 %v600, 7
    %v602 = vsub.s32 0, %v601
    %v603 = vrot.slane %v598, %v602
    %v606 = vsel %vm176, %v593, 0
    %608 = vmatprep.subr.mxu0 0.0
    %609 = vmatpush1.msra.mxu0 %v594
    %610 = vmatprep.subr.mxu0 0.0
    %611 = vmatpush1.msra.mxu0 %v595
    %612 = vmatprep.subr.mxu0 0.0
    %613 = vmatpush1.msra.mxu0 %v596
    %614 = vmatprep.subr.mxu0 0.0
    %615 = vmatpush1.msra.mxu0 %v597
    %616 = vmatprep.subr.mxu0 0.0
    %617 = vmatpush1.msra.mxu0 0.0
    %618 = vmatprep.subr.mxu0 0.0
    %619 = vmatpush1.msra.mxu0 0.0
    %620 = vmatprep.subr.mxu0 0.0
    %621 = vmatpush1.msra.mxu0 0.0
    %622 = vmatprep.subr.mxu0 0.0
    %623 = vmatpush1.msra.mxu0 0.0
    %624 = vmatprep.subr.mxu0 0.0
    %625 = vmatpush1.msra.mxu0 0.0
    %626 = vmatprep.subr.mxu0 0.0
    %627 = vmatpush1.msra.mxu0 0.0
    %628 = vmatprep.subr.mxu0 0.0
    %629 = vmatpush1.msra.mxu0 0.0
    %630 = vmatprep.subr.mxu0 0.0
    %631 = vmatpush1.msra.mxu0 0.0
    %632 = vmatprep.subr.mxu0 0.0
    %633 = vmatpush1.msra.mxu0 0.0
    %634 = vmatprep.subr.mxu0 0.0
    %635 = vmatpush1.msra.mxu0 0.0
    %636 = vmatprep.subr.mxu0 0.0
    %637 = vmatpush1.msra.mxu0 0.0
    %638 = vmatprep.subr.mxu0 0.0
    %639 = vmatpush1.msra.mxu0 0.0
    %640 = vmatprep.subr.mxu0 0.0
    %641 = vmatpush1.msra.mxu0 0.0
    %642 = vmatprep.subr.mxu0 0.0
    %643 = vmatpush1.msra.mxu0 0.0
    %644 = vmatprep.subr.mxu0 0.0
    %645 = vmatpush1.msra.mxu0 0.0
    %646 = vmatprep.subr.mxu0 0.0
    %647 = vmatpush1.msra.mxu0 0.0
    %648 = vmatprep.subr.mxu0 0.0
    %649 = vmatpush1.msra.mxu0 0.0
    %650 = vmatprep.subr.mxu0 0.0
    %651 = vmatpush1.msra.mxu0 0.0
    %652 = vmatprep.subr.mxu0 0.0
    %653 = vmatpush1.msra.mxu0 0.0
    %654 = vmatprep.subr.mxu0 0.0
    %655 = vmatpush1.msra.mxu0 0.0
    %656 = vmatprep.subr.mxu0 0.0
    %657 = vmatpush1.msra.mxu0 0.0
    %658 = vmatprep.subr.mxu0 0.0
    %659 = vmatpush1.msra.mxu0 0.0
    %660 = vmatprep.subr.mxu0 0.0
    %661 = vmatpush1.msra.mxu0 0.0
    %662 = vmatprep.subr.mxu0 0.0
    %663 = vmatpush1.msra.mxu0 0.0
    %664 = vmatprep.subr.mxu0 0.0
    %665 = vmatpush1.msra.mxu0 0.0
    %666 = vmatprep.subr.mxu0 0.0
    %667 = vmatpush1.msra.mxu0 0.0
    %668 = vmatprep.subr.mxu0 0.0
    %669 = vmatpush1.msra.mxu0 0.0
    %670 = vmatprep.subr.mxu0 0.0
    %671 = vmatpush1.msra.mxu0 0.0
    %672 = vmatprep.mubr.f32.mxu0 0.0
    %673 = vmatmul.mubr.f32.gmra.mrb[0].mxu0 %v606
    %v674 = vpop.f32.mrb[0].mxu0
    %v675 = vadd.f32 %v603, %v674
    %v676 = vpop.f32.mrb[0].mxu0
    %677 = vdwg.mxu0
    %v678 = vmax.f32 %v675, 0.0
    %v679 = vld [vmem:[%s16] sm:$0xff]
    %v680 = vld [vmem:[%s16 + $0x8] sm:$0xff]
    %v681 = vld [vmem:[%s16 + $0x10] sm:$0xff]
    %v682 = vld [vmem:[%s16 + $0x18] sm:$0xff]
    %v683 = vld [vmem:[%s17] sm:$0x1]
    %v685 = vlaneseq
    %v686 = vshrl.u32 %v685, 7
    %v687 = vsub.s32 0, %v686
    %v688 = vrot.slane %v683, %v687
    %690 = vmatprep.subr.mxu0 0.0
    %691 = vmatpush1.msra.mxu0 %v679
    %692 = vmatprep.subr.mxu0 0.0
    %693 = vmatpush1.msra.mxu0 %v680
    %694 = vmatprep.subr.mxu0 0.0
    %695 = vmatpush1.msra.mxu0 %v681
    %696 = vmatprep.subr.mxu0 0.0
    %697 = vmatpush1.msra.mxu0 %v682
    %698 = vmatprep.subr.mxu0 0.0
    %699 = vmatpush1.msra.mxu0 0.0
    %700 = vmatprep.subr.mxu0 0.0
    %701 = vmatpush1.msra.mxu0 0.0
    %702 = vmatprep.subr.mxu0 0.0
    %703 = vmatpush1.msra.mxu0 0.0
    %704 = vmatprep.subr.mxu0 0.0
    %705 = vmatpush1.msra.mxu0 0.0
    %706 = vmatprep.subr.mxu0 0.0
    %707 = vmatpush1.msra.mxu0 0.0
    %708 = vmatprep.subr.mxu0 0.0
    %709 = vmatpush1.msra.mxu0 0.0
    %710 = vmatprep.subr.mxu0 0.0
    %711 = vmatpush1.msra.mxu0 0.0
    %712 = vmatprep.subr.mxu0 0.0
    %713 = vmatpush1.msra.mxu0 0.0
    %714 = vmatprep.subr.mxu0 0.0
    %715 = vmatpush1.msra.mxu0 0.0
    %716 = vmatprep.subr.mxu0 0.0
    %717 = vmatpush1.msra.mxu0 0.0
    %718 = vmatprep.subr.mxu0 0.0
    %719 = vmatpush1.msra.mxu0 0.0
    %720 = vmatprep.subr.mxu0 0.0
    %721 = vmatpush1.msra.mxu0 0.0
    %722 = vmatprep.subr.mxu0 0.0
    %723 = vmatpush1.msra.mxu0 0.0
    %724 = vmatprep.subr.mxu0 0.0
    %725 = vmatpush1.msra.mxu0 0.0
    %726 = vmatprep.subr.mxu0 0.0
    %727 = vmatpush1.msra.mxu0 0.0
    %728 = vmatprep.subr.mxu0 0.0
    %729 = vmatpush1.msra.mxu0 0.0
    %730 = vmatprep.subr.mxu0 0.0
    %731 = vmatpush1.msra.mxu0 0.0
    %732 = vmatprep.subr.mxu0 0.0
    %733 = vmatpush1.msra.mxu0 0.0
    %734 = vmatprep.subr.mxu0 0.0
    %735 = vmatpush1.msra.mxu0 0.0
    %736 = vmatprep.subr.mxu0 0.0
    %737 = vmatpush1.msra.mxu0 0.0
    %738 = vmatprep.subr.mxu0 0.0
    %739 = vmatpush1.msra.mxu0 0.0
    %740 = vmatprep.subr.mxu0 0.0
    %741 = vmatpush1.msra.mxu0 0.0
    %742 = vmatprep.subr.mxu0 0.0
    %743 = vmatpush1.msra.mxu0 0.0
    %744 = vmatprep.subr.mxu0 0.0
    %745 = vmatpush1.msra.mxu0 0.0
    %746 = vmatprep.subr.mxu0 0.0
    %747 = vmatpush1.msra.mxu0 0.0
    %748 = vmatprep.subr.mxu0 0.0
    %749 = vmatpush1.msra.mxu0 0.0
    %750 = vmatprep.subr.mxu0 0.0
    %751 = vmatpush1.msra.mxu0 0.0
    %752 = vmatprep.subr.mxu0 0.0
    %753 = vmatpush1.msra.mxu0 0.0
    %754 = vmatprep.mubr.f32.mxu0 0.0
    %755 = vmatmul.mubr.f32.gmra.mrb[0].mxu0 %v258
    %v756 = vpop.f32.mrb[0].mxu0
    %v757 = vadd.f32 %v688, %v756
    %v758 = vpop.f32.mrb[0].mxu0
    %759 = vdwg.mxu0
    %vm760 = vcmask 25600
    %v761 = vsel %vm760, %v757, -inf
    %762 = vmax.xlane.f32.xlu0 %v761
    %v763 = vpop.xlane.xlu0 %762
    %v764 = vsub.f32 %v757, %v763
    %v765 = vmul.f32 %v764, 1.442695
    %v766 = vpow.pop %v765
    %v767 = vsel %vm760, %v766, 0.0
    %768 = vadd.xlane.f32.xlu0 %v767
    %v769 = vpop.xlane.xlu0 %768
    %v770 = vrcp.pop %v769
    %v771 = vmul.f32 %v766, %v770
    %v772 = vld [vmem:[%s18] sm:$0xff]
    %v773 = vld [vmem:[%s18 + $0x8] sm:$0xff]
    %v774 = vld [vmem:[%s18 + $0x10] sm:$0xff]
    %v775 = vld [vmem:[%s18 + $0x18] sm:$0xff]
    %v776 = vld [vmem:[%s19] sm:$0x1]
    %v778 = vlaneseq
    %v779 = vshrl.u32 %v778, 7
    %v780 = vsub.s32 0, %v779
    %v781 = vrot.slane %v776, %v780
    %783 = vmatprep.subr.mxu0 0.0
    %784 = vmatpush1.msra.mxu0 %v772
    %785 = vmatprep.subr.mxu0 0.0
    %786 = vmatpush1.msra.mxu0 %v773
    %787 = vmatprep.subr.mxu0 0.0
    %788 = vmatpush1.msra.mxu0 %v774
    %789 = vmatprep.subr.mxu0 0.0
    %790 = vmatpush1.msra.mxu0 %v775
    %791 = vmatprep.subr.mxu0 0.0
    %792 = vmatpush1.msra.mxu0 0.0
    %793 = vmatprep.subr.mxu0 0.0
    %794 = vmatpush1.msra.mxu0 0.0
    %795 = vmatprep.subr.mxu0 0.0
    %796 = vmatpush1.msra.mxu0 0.0
    %797 = vmatprep.subr.mxu0 0.0
    %798 = vmatpush1.msra.mxu0 0.0
    %799 = vmatprep.subr.mxu0 0.0
    %800 = vmatpush1.msra.mxu0 0.0
    %801 = vmatprep.subr.mxu0 0.0
    %802 = vmatpush1.msra.mxu0 0.0
    %803 = vmatprep.subr.mxu0 0.0
    %804 = vmatpush1.msra.mxu0 0.0
    %805 = vmatprep.subr.mxu0 0.0
    %806 = vmatpush1.msra.mxu0 0.0
    %807 = vmatprep.subr.mxu0 0.0
    %808 = vmatpush1.msra.mxu0 0.0
    %809 = vmatprep.subr.mxu0 0.0
    %810 = vmatpush1.msra.mxu0 0.0
    %811 = vmatprep.subr.mxu0 0.0
    %812 = vmatpush1.msra.mxu0 0.0
    %813 = vmatprep.subr.mxu0 0.0
    %814 = vmatpush1.msra.mxu0 0.0
    %815 = vmatprep.subr.mxu0 0.0
    %816 = vmatpush1.msra.mxu0 0.0
    %817 = vmatprep.subr.mxu0 0.0
    %818 = vmatpush1.msra.mxu0 0.0
    %819 = vmatprep.subr.mxu0 0.0
    %820 = vmatpush1.msra.mxu0 0.0
    %821 = vmatprep.subr.mxu0 0.0
    %822 = vmatpush1.msra.mxu0 0.0
    %823 = vmatprep.subr.mxu0 0.0
    %824 = vmatpush1.msra.mxu0 0.0
    %825 = vmatprep.subr.mxu0 0.0
    %826 = vmatpush1.msra.mxu0 0.0
    %827 = vmatprep.subr.mxu0 0.0
    %828 = vmatpush1.msra.mxu0 0.0
    %829 = vmatprep.subr.mxu0 0.0
    %830 = vmatpush1.msra.mxu0 0.0
    %831 = vmatprep.subr.mxu0 0.0
    %832 = vmatpush1.msra.mxu0 0.0
    %833 = vmatprep.subr.mxu0 0.0
    %834 = vmatpush1.msra.mxu0 0.0
    %835 = vmatprep.subr.mxu0 0.0
    %836 = vmatpush1.msra.mxu0 0.0
    %837 = vmatprep.subr.mxu0 0.0
    %838 = vmatpush1.msra.mxu0 0.0
    %839 = vmatprep.subr.mxu0 0.0
    %840 = vmatpush1.msra.mxu0 0.0
    %841 = vmatprep.subr.mxu0 0.0
    %842 = vmatpush1.msra.mxu0 0.0
    %843 = vmatprep.subr.mxu0 0.0
    %844 = vmatpush1.msra.mxu0 0.0
    %845 = vmatprep.subr.mxu0 0.0
    %846 = vmatpush1.msra.mxu0 0.0
    %847 = vmatprep.mubr.f32.mxu0 0.0
    %848 = vmatmul.mubr.f32.gmra.mrb[0].mxu0 %v521
    %v849 = vpop.f32.mrb[0].mxu0
    %v850 = vadd.f32 %v781, %v849
    %v851 = vpop.f32.mrb[0].mxu0
    %852 = vdwg.mxu0
    %v853 = vsel %vm760, %v850, -inf
    %854 = vmax.xlane.f32.xlu0 %v853
    %v855 = vpop.xlane.xlu0 %854
    %v856 = vsub.f32 %v850, %v855
    %v857 = vmul.f32 %v856, 1.442695
    %v858 = vpow.pop %v857
    %v859 = vsel %vm760, %v858, 0.0
    %860 = vadd.xlane.f32.xlu0 %v859
    %v861 = vpop.xlane.xlu0 %860
    %v862 = vrcp.pop %v861
    %v863 = vmul.f32 %v858, %v862
    %v864 = vld [vmem:[%s20] sm:$0xff]
    %v865 = vld [vmem:[%s20 + $0x8] sm:$0xff]
    %v866 = vld [vmem:[%s20 + $0x10] sm:$0xff]
    %v867 = vld [vmem:[%s20 + $0x18] sm:$0xff]
    %v868 = vld [vmem:[%s21] sm:$0x1]
    %v870 = vlaneseq
    %v871 = vshrl.u32 %v870, 7
    %v872 = vsub.s32 0, %v871
    %v873 = vrot.slane %v868, %v872
    %875 = vmatprep.subr.mxu0 0.0
    %876 = vmatpush1.msra.mxu0 %v864
    %877 = vmatprep.subr.mxu0 0.0
    %878 = vmatpush1.msra.mxu0 %v865
    %879 = vmatprep.subr.mxu0 0.0
    %880 = vmatpush1.msra.mxu0 %v866
    %881 = vmatprep.subr.mxu0 0.0
    %882 = vmatpush1.msra.mxu0 %v867
    %883 = vmatprep.subr.mxu0 0.0
    %884 = vmatpush1.msra.mxu0 0.0
    %885 = vmatprep.subr.mxu0 0.0
    %886 = vmatpush1.msra.mxu0 0.0
    %887 = vmatprep.subr.mxu0 0.0
    %888 = vmatpush1.msra.mxu0 0.0
    %889 = vmatprep.subr.mxu0 0.0
    %890 = vmatpush1.msra.mxu0 0.0
    %891 = vmatprep.subr.mxu0 0.0
    %892 = vmatpush1.msra.mxu0 0.0
    %893 = vmatprep.subr.mxu0 0.0
    %894 = vmatpush1.msra.mxu0 0.0
    %895 = vmatprep.subr.mxu0 0.0
    %896 = vmatpush1.msra.mxu0 0.0
    %897 = vmatprep.subr.mxu0 0.0
    %898 = vmatpush1.msra.mxu0 0.0
    %899 = vmatprep.subr.mxu0 0.0
    %900 = vmatpush1.msra.mxu0 0.0
    %901 = vmatprep.subr.mxu0 0.0
    %902 = vmatpush1.msra.mxu0 0.0
    %903 = vmatprep.subr.mxu0 0.0
    %904 = vmatpush1.msra.mxu0 0.0
    %905 = vmatprep.subr.mxu0 0.0
    %906 = vmatpush1.msra.mxu0 0.0
    %907 = vmatprep.subr.mxu0 0.0
    %908 = vmatpush1.msra.mxu0 0.0
    %909 = vmatprep.subr.mxu0 0.0
    %910 = vmatpush1.msra.mxu0 0.0
    %911 = vmatprep.subr.mxu0 0.0
    %912 = vmatpush1.msra.mxu0 0.0
    %913 = vmatprep.subr.mxu0 0.0
    %914 = vmatpush1.msra.mxu0 0.0
    %915 = vmatprep.subr.mxu0 0.0
    %916 = vmatpush1.msra.mxu0 0.0
    %917 = vmatprep.subr.mxu0 0.0
    %918 = vmatpush1.msra.mxu0 0.0
    %919 = vmatprep.subr.mxu0 0.0
    %920 = vmatpush1.msra.mxu0 0.0
    %921 = vmatprep.subr.mxu0 0.0
    %922 = vmatpush1.msra.mxu0 0.0
    %923 = vmatprep.subr.mxu0 0.0
    %924 = vmatpush1.msra.mxu0 0.0
    %925 = vmatprep.subr.mxu0 0.0
    %926 = vmatpush1.msra.mxu0 0.0
    %927 = vmatprep.subr.mxu0 0.0
    %928 = vmatpush1.msra.mxu0 0.0
    %929 = vmatprep.subr.mxu0 0.0
    %930 = vmatpush1.msra.mxu0 0.0
    %931 = vmatprep.subr.mxu0 0.0
    %932 = vmatpush1.msra.mxu0 0.0
    %933 = vmatprep.subr.mxu0 0.0
    %934 = vmatpush1.msra.mxu0 0.0
    %935 = vmatprep.subr.mxu0 0.0
    %936 = vmatpush1.msra.mxu0 0.0
    %937 = vmatprep.subr.mxu0 0.0
    %938 = vmatpush1.msra.mxu0 0.0
    %939 = vmatprep.mubr.f32.mxu0 0.0
    %940 = vmatmul.mubr.f32.gmra.mrb[0].mxu0 %v606
    %v941 = vpop.f32.mrb[0].mxu0
    %v942 = vadd.f32 %v873, %v941
    %v943 = vpop.f32.mrb[0].mxu0
    %944 = vdwg.mxu0
    %v945 = vsel %vm760, %v942, -inf
    %946 = vmax.xlane.f32.xlu0 %v945
    %v947 = vpop.xlane.xlu0 %946
    %v948 = vsub.f32 %v942, %v947
    %v949 = vmul.f32 %v948, 1.442695
    %v950 = vpow.pop %v949
    %v951 = vsel %vm760, %v950, 0.0
    %952 = vadd.xlane.f32.xlu0 %v951
    %v953 = vpop.xlane.xlu0 %952
    %v954 = vrcp.pop %v953
    %v955 = vmul.f32 %v950, %v954
    %v956 = vld [vmem:[%s22] sm:$0xff]
    %v957 = vld [vmem:[%s22 + $0x8] sm:$0xff]
    %v958 = vld [vmem:[%s22 + $0x10] sm:$0xff]
    %v959 = vld [vmem:[%s22 + $0x18] sm:$0xff]
    %v960 = vld [vmem:[%s23] sm:$0x1]
    %v962 = vlaneseq
    %v963 = vshrl.u32 %v962, 7
    %v964 = vsub.s32 0, %v963
    %v965 = vrot.slane %v960, %v964
    %v968 = vsel %vm176, %v678, 0
    %970 = vmatprep.subr.mxu0 0.0
    %971 = vmatpush1.msra.mxu0 %v956
    %972 = vmatprep.subr.mxu0 0.0
    %973 = vmatpush1.msra.mxu0 %v957
    %974 = vmatprep.subr.mxu0 0.0
    %975 = vmatpush1.msra.mxu0 %v958
    %976 = vmatprep.subr.mxu0 0.0
    %977 = vmatpush1.msra.mxu0 %v959
    %978 = vmatprep.subr.mxu0 0.0
    %979 = vmatpush1.msra.mxu0 0.0
    %980 = vmatprep.subr.mxu0 0.0
    %981 = vmatpush1.msra.mxu0 0.0
    %982 = vmatprep.subr.mxu0 0.0
    %983 = vmatpush1.msra.mxu0 0.0
    %984 = vmatprep.subr.mxu0 0.0
    %985 = vmatpush1.msra.mxu0 0.0
    %986 = vmatprep.subr.mxu0 0.0
    %987 = vmatpush1.msra.mxu0 0.0
    %988 = vmatprep.subr.mxu0 0.0
    %989 = vmatpush1.msra.mxu0 0.0
    %990 = vmatprep.subr.mxu0 0.0
    %991 = vmatpush1.msra.mxu0 0.0
    %992 = vmatprep.subr.mxu0 0.0
    %993 = vmatpush1.msra.mxu0 0.0
    %994 = vmatprep.subr.mxu0 0.0
    %995 = vmatpush1.msra.mxu0 0.0
    %996 = vmatprep.subr.mxu0 0.0
    %997 = vmatpush1.msra.mxu0 0.0
    %998 = vmatprep.subr.mxu0 0.0
    %999 = vmatpush1.msra.mxu0 0.0
    %1000 = vmatprep.subr.mxu0 0.0
    %1001 = vmatpush1.msra.mxu0 0.0
    %1002 = vmatprep.subr.mxu0 0.0
    %1003 = vmatpush1.msra.mxu0 0.0
    %1004 = vmatprep.subr.mxu0 0.0
    %1005 = vmatpush1.msra.mxu0 0.0
    %1006 = vmatprep.subr.mxu0 0.0
    %1007 = vmatpush1.msra.mxu0 0.0
    %1008 = vmatprep.subr.mxu0 0.0
    %1009 = vmatpush1.msra.mxu0 0.0
    %1010 = vmatprep.subr.mxu0 0.0
    %1011 = vmatpush1.msra.mxu0 0.0
    %1012 = vmatprep.subr.mxu0 0.0
    %1013 = vmatpush1.msra.mxu0 0.0
    %1014 = vmatprep.subr.mxu0 0.0
    %1015 = vmatpush1.msra.mxu0 0.0
    %1016 = vmatprep.subr.mxu0 0.0
    %1017 = vmatpush1.msra.mxu0 0.0
    %1018 = vmatprep.subr.mxu0 0.0
    %1019 = vmatpush1.msra.mxu0 0.0
    %1020 = vmatprep.subr.mxu0 0.0
    %1021 = vmatpush1.msra.mxu0 0.0
    %1022 = vmatprep.subr.mxu0 0.0
    %1023 = vmatpush1.msra.mxu0 0.0
    %1024 = vmatprep.subr.mxu0 0.0
    %1025 = vmatpush1.msra.mxu0 0.0
    %1026 = vmatprep.subr.mxu0 0.0
    %1027 = vmatpush1.msra.mxu0 0.0
    %1028 = vmatprep.subr.mxu0 0.0
    %1029 = vmatpush1.msra.mxu0 0.0
    %1030 = vmatprep.subr.mxu0 0.0
    %1031 = vmatpush1.msra.mxu0 0.0
    %1032 = vmatprep.subr.mxu0 0.0
    %1033 = vmatpush1.msra.mxu0 0.0
    %1034 = vmatprep.mubr.f32.mxu0 0.0
    %1035 = vmatmul.mubr.f32.gmra.mrb[0].mxu0 %v968
    %v1036 = vpop.f32.mrb[0].mxu0
    %v1037 = vadd.f32 %v965, %v1036
    %v1038 = vpop.f32.mrb[0].mxu0
    %1039 = vdwg.mxu0
    %v1040 = vsel %vm760, %v1037, -inf
    %1041 = vmax.xlane.f32.xlu0 %v1040
    %v1042 = vpop.xlane.xlu0 %1041
    %v1043 = vsub.f32 %v1037, %v1042
    %v1044 = vmul.f32 %v1043, 1.442695
    %v1045 = vpow.pop %v1044
    %v1046 = vsel %vm760, %v1045, 0.0
    %1047 = vadd.xlane.f32.xlu0 %v1046
    %v1048 = vpop.xlane.xlu0 %1047
    %v1049 = vrcp.pop %v1048
    %v1050 = vmul.f32 %v1045, %v1049
    %1052 = vrot.lane.b32.xlu0 %v863, 4
    %v1053 = vpop.permute.xlu0 %1052
    %1056 = vrot.lane.b32.xlu0 %v955, 8
    %v1057 = vpop.permute.xlu0 %1056
    %1060 = vrot.lane.b32.xlu0 %v1050, 12
    %v1061 = vpop.permute.xlu0 %1060
    %vm1063 = vcmask 31744
    %v1064 = vsel %vm1063, %v771, %v1053
    %v1065 = vsel %vm330, %v1064, %v1057
    %vm1066 = vcmask 97280
    %v1067 = vsel %vm1066, %v1065, %v1061
    %vm1068 = vcmask 123904
    %1069 = vst.msk [vmem:[#allocation2] sm:$0x3] %vm1068, %v1067
    // Predicated region
    $region98: #{tpu_custom_call.1} parent=1 // pred_check
      _
    $region99: #{tpu_custom_call.1} parent=1 // pred_check_branch
      %1071 = sbr.rel (0) target = $region101
    $region100: #{tpu_custom_call.1} parent=1 // pred_region
      %s1073 = ssub.s32 32, 32
      %1074 = vsyncadd [#allocation3], %s1073
      %s1076 = sshll.u32 [#allocation2], 4
      %s1077 = int_to_ptr.vmem [resolvable:$true] %s1076
      %1079 = dma.vmem_to_hbm [thread:$0]  %s1077, 32, %s24, [#allocation3]
    $region101: #{tpu_custom_call.1} parent=1 // pred_fallthru
      _
    // Predicated region
    $region102: #{tpu_custom_call.1} parent=1 // pred_check
      _
    $region103: #{tpu_custom_call.1} parent=1 // pred_check_branch
      %1081 = sbr.rel (0) target = $region105
    $region104: #{tpu_custom_call.1} parent=1 // pred_region
      %1082 = dma.done [#allocation3], 32
    $region105: #{tpu_custom_call.1} parent=1 // pred_fallthru
      _
    %1083 = vsyncpa [#allocation3], 1

</llo_original>
